<compile_context>
chip_gen: v5e
topology: v5e:2x2
jax: 0.10.0
libtpu: 0.0.40
codegen_flags: <defaults>
</compile_context>

<pallas_src>
import jax
import jax.numpy as jnp
from jax.experimental import pallas as pl
from jax.experimental.pallas import tpu as pltpu

HIDDEN = 128


def _round_up(n, m):
    return ((n + m - 1) // m) * m


def _use_bf16_epilogue():
    """bf16 VALUs exist on v6e/v7x; keep the f32 epilogue on v5e and older."""
    try:
        kind = jax.devices()[0].device_kind.lower()
    except Exception:
        return False
    return ("v6" in kind) or ("v7" in kind)


def make_dqn_kernel(use_bf16_epilogue):
    epi = jnp.bfloat16 if use_bf16_epilogue else jnp.float32

    def dqn_mlp_kernel(x_ref, w1_ref, b1_ref, w2_ref, b2_ref, w3_ref, b3_ref,
                       out_ref):
        """Fused MLP tile: relu(relu(x@W1+b1)@W2+b2)@W3+b3.

        x / weights are bf16 (MXU-native); matmuls accumulate in f32. The
        bias/ReLU epilogue runs in `epi` (bf16 on v6e/v7x, f32 on v5e); the
        final bias add and store are f32.
        """
        x = x_ref[...]                                   # bf16, (tile_b, num_inputs)
        h1 = jnp.dot(x, w1_ref[...], preferred_element_type=jnp.float32)
        h1 = jnp.maximum(h1.astype(epi) + b1_ref[...].astype(epi), 0.0)
        h1 = h1.astype(jnp.bfloat16)
        h2 = jnp.dot(h1, w2_ref[...], preferred_element_type=jnp.float32)
        h2 = jnp.maximum(h2.astype(epi) + b2_ref[...].astype(epi), 0.0)
        h2 = h2.astype(jnp.bfloat16)
        out = jnp.dot(h2, w3_ref[...], preferred_element_type=jnp.float32)
        out = out + b3_ref[...]                          # f32, narrow (num_actions)
        out_ref[...] = out.astype(out_ref.dtype)

    return dqn_mlp_kernel


def dqn_forward(x, packed_params, num_actions, *, max_tile_b=1024):
    """Run the DQN forward pass; returns [batch, num_actions] float32.

    `packed_params` come from `pack_params` (bf16 weights [in, out],
    f32 biases shaped (1, out); no lane padding).
    """
    w1, b1, w2, b2, w3, b3 = packed_params
    batch, num_inputs = x.shape
    hidden = w1.shape[1]
    out_w = w3.shape[1]                                  # == num_actions

    # Tile selection: pick n_tiles first (>=2 when batch > 16 so the
    # "parallel" batch axis shards across both v7x TensorCores; harmless on
    # v5e/v6e where the grid is a sequential loop), then size tile_b to
    # minimize padded-batch waste. Sublane-align tile_b to 16 (bf16 packing).
    min_tiles = 2 if batch > 16 else 1
    n_tiles = max(min_tiles, pl.cdiv(batch, max_tile_b))
    tile_b = _round_up(max(pl.cdiv(batch, n_tiles), 1), 16)
    padded_b = n_tiles * tile_b
    grid = (n_tiles,)

    # Zero-pad the batch rows and cast to bf16 in the same copy; padded rows
    # are sliced off below.
    x_p = jnp.zeros((padded_b, num_inputs), jnp.bfloat16)
    x_p = x_p.at[:batch, :].set(x.astype(jnp.bfloat16))

    def const_map(i):
        return (0, 0)

    x_spec = pl.BlockSpec((tile_b, num_inputs), lambda i: (i, 0))
    # Narrow output: last dim equals the full array width, so the block is
    # legal; the tiny per-row write (num_actions f32) is far cheaper than a
    # lane-padded 128-wide slab even if the VMEM-side store is masked.
    out_spec = pl.BlockSpec((tile_b, out_w), lambda i: (i, 0))
    w_specs = [pl.BlockSpec(a.shape, const_map) for a in (w1, b1, w2, b2, w3, b3)]

    mac = num_inputs * hidden + hidden * hidden + hidden * out_w
    cost = pl.CostEstimate(
        flops=2 * padded_b * mac,
        transcendentals=0,
        bytes_accessed=(padded_b * num_inputs * 2        # bf16 x
                        + mac * 2                        # bf16 weights
                        + (2 * hidden + out_w) * 4       # f32 biases
                        + padded_b * out_w * 4),         # f32 out (narrow)
    )

    kernel = make_dqn_kernel(_use_bf16_epilogue())

    out_padded = pl.pallas_call(
        kernel,
        out_shape=jax.ShapeDtypeStruct((padded_b, out_w), jnp.float32),
        grid=grid,
        in_specs=[x_spec] + w_specs,
        out_specs=out_spec,
        compiler_params=pltpu.CompilerParams(
            dimension_semantics=("parallel",),           # shards tiles on v7x's 2 TCs
            vmem_limit_bytes=32 * 1024 * 1024,
        ),
        cost_estimate=cost,
    )(x_p, w1, b1, w2, b2, w3, b3)

    return out_padded[:batch, :num_actions]


def init_dqn_params(key, num_inputs, num_actions, hidden=HIDDEN):
    """PyTorch nn.Linear default init: U(-1/sqrt(fan_in), 1/sqrt(fan_in)).
    Weights stored transposed: [in_features, out_features]; biases [out]."""
    keys = jax.random.split(key, 6)

    def linear(kw, kb, fan_in, fan_out):
        bound = 1.0 / jnp.sqrt(jnp.float32(fan_in))
        w = jax.random.uniform(kw, (fan_in, fan_out), jnp.float32, -bound, bound)
        b = jax.random.uniform(kb, (fan_out,), jnp.float32, -bound, bound)
        return w, b

    w1, b1 = linear(keys[0], keys[1], num_inputs, hidden)
    w2, b2 = linear(keys[2], keys[3], hidden, hidden)
    w3, b3 = linear(keys[4], keys[5], hidden, num_actions)
    return (w1, b1, w2, b2, w3, b3)


def pack_params(params):
    """Cast weights to bf16 (kept [in, out], no lane padding); biases stay
    f32 shaped (1, out) for broadcast inside the kernel."""
    w1, b1, w2, b2, w3, b3 = params

    def pack_w(w):
        return w.astype(jnp.bfloat16)

    def pack_b(b):
        return b.reshape(1, -1).astype(jnp.float32)

    return (
        pack_w(w1), pack_b(b1),
        pack_w(w2), pack_b(b2),
        pack_w(w3), pack_b(b3),
    )


def dqn_forward_ref(x, params):
    """Pure-JAX f32 reference (mirrors the PyTorch nn.Sequential forward)."""
    w1, b1, w2, b2, w3, b3 = params
    h1 = jnp.maximum(x @ w1 + b1, 0.0)
    h2 = jnp.maximum(h1 @ w2 + b2, 0.0)
    return h2 @ w3 + b3


# TODO(synk): ReplayBuffer, epsilon-greedy `work()`, Adam optimizer and
# `trainStep()` are host-side control / training logic with no Pallas
# equivalent; only the forward pass is implemented here.

if __name__ == "__main__":
    # Small shapes consistent with the module: batch=2, num_inputs=8,
    # hidden=128 (fixed by the module), num_actions=4.
    batch, num_inputs, num_actions = 2, 8, 4

    key = jax.random.PRNGKey(0)
    k_params, k_x = jax.random.split(key)
    params = init_dqn_params(k_params, num_inputs, num_actions)
    packed = pack_params(params)
    x = jax.random.normal(k_x, (batch, num_inputs), jnp.float32)

    out = dqn_forward(x, packed, num_actions)
    out = jax.block_until_ready(out)

    ref = dqn_forward_ref(x, params)
    assert out.shape == (batch, num_actions)
    # bf16 matmul inputs with f32 accumulation -> bf16-level tolerance vs f32 ref.
    assert jnp.allclose(out, ref, atol=3e-2, rtol=3e-2), "mismatch vs reference"

    print("KERNEL_OK")
</pallas_src>

<mosaic_0001>
module attributes {stable_mosaic.version = 11 : i64} {
  func.func @dqn_mlp_kernel(%arg0: i32, %arg1: memref<16x8xbf16, #tpu.memory_space<vmem>>, %arg2: memref<8x128xbf16, #tpu.memory_space<vmem>>, %arg3: memref<1x128xf32, #tpu.memory_space<vmem>>, %arg4: memref<128x128xbf16, #tpu.memory_space<vmem>>, %arg5: memref<1x128xf32, #tpu.memory_space<vmem>>, %arg6: memref<128x4xbf16, #tpu.memory_space<vmem>>, %arg7: memref<1x4xf32, #tpu.memory_space<vmem>>, %arg8: memref<16x4xf32, #tpu.memory_space<vmem>>) attributes {dimension_semantics = [#tpu.dimension_semantics<parallel>], iteration_bounds = array<i64: 1>, scalar_prefetch = 0 : i64, scratch_operands = 0 : i64, tpu.core_type = #tpu.core_type<tc>, window_params = [{transform_indices = @transform_0, window_bounds = array<i64: 16, 8>}, {pipeline_mode = #tpu.pipeline_mode<synchronous>, transform_indices = @transform_1, window_bounds = array<i64: 8, 128>}, {pipeline_mode = #tpu.pipeline_mode<synchronous>, transform_indices = @transform_2, window_bounds = array<i64: 1, 128>}, {pipeline_mode = #tpu.pipeline_mode<synchronous>, transform_indices = @transform_3, window_bounds = array<i64: 128, 128>}, {pipeline_mode = #tpu.pipeline_mode<synchronous>, transform_indices = @transform_4, window_bounds = array<i64: 1, 128>}, {pipeline_mode = #tpu.pipeline_mode<synchronous>, transform_indices = @transform_5, window_bounds = array<i64: 128, 4>}, {pipeline_mode = #tpu.pipeline_mode<synchronous>, transform_indices = @transform_6, window_bounds = array<i64: 1, 4>}, {transform_indices = @transform_7, window_bounds = array<i64: 16, 4>}]} {
    %c0 = arith.constant 0 : index
    %c0_0 = arith.constant 0 : index
    %0 = vector.load %arg1[%c0, %c0_0] : memref<16x8xbf16, #tpu.memory_space<vmem>>, vector<16x8xbf16>
    %c0_1 = arith.constant 0 : index
    %c0_2 = arith.constant 0 : index
    %1 = vector.load %arg2[%c0_1, %c0_2] : memref<8x128xbf16, #tpu.memory_space<vmem>>, vector<8x128xbf16>
    %cst = arith.constant dense<0.000000e+00> : vector<16x128xf32>
    %2 = tpu.matmul %0, %1, %cst {dimension_numbers = #tpu.dot_dimension_numbers<[1], [0], [0], [1], [0, 0, 1, 1], [], []>} : vector<16x8xbf16>, vector<8x128xbf16>, vector<16x128xf32> -> vector<16x128xf32>
    %c0_3 = arith.constant 0 : index
    %c0_4 = arith.constant 0 : index
    %3 = vector.load %arg3[%c0_3, %c0_4] : memref<1x128xf32, #tpu.memory_space<vmem>>, vector<1x128xf32>
    %4 = vector.broadcast %3 : vector<1x128xf32> to vector<16x128xf32>
    %5 = arith.addf %2, %4 : vector<16x128xf32>
    %cst_5 = arith.constant 0.000000e+00 : f32
    %6 = vector.broadcast %cst_5 : f32 to vector<16x128xf32>
    %7 = arith.maximumf %5, %6 : vector<16x128xf32>
    %8 = arith.truncf %7 : vector<16x128xf32> to vector<16x128xbf16>
    %c0_6 = arith.constant 0 : index
    %c0_7 = arith.constant 0 : index
    %9 = vector.load %arg4[%c0_6, %c0_7] : memref<128x128xbf16, #tpu.memory_space<vmem>>, vector<128x128xbf16>
    %cst_8 = arith.constant dense<0.000000e+00> : vector<16x128xf32>
    %10 = tpu.matmul %8, %9, %cst_8 {dimension_numbers = #tpu.dot_dimension_numbers<[1], [0], [0], [1], [0, 0, 1, 1], [], []>} : vector<16x128xbf16>, vector<128x128xbf16>, vector<16x128xf32> -> vector<16x128xf32>
    %c0_9 = arith.constant 0 : index
    %c0_10 = arith.constant 0 : index
    %11 = vector.load %arg5[%c0_9, %c0_10] : memref<1x128xf32, #tpu.memory_space<vmem>>, vector<1x128xf32>
    %12 = vector.broadcast %11 : vector<1x128xf32> to vector<16x128xf32>
    %13 = arith.addf %10, %12 : vector<16x128xf32>
    %cst_11 = arith.constant 0.000000e+00 : f32
    %14 = vector.broadcast %cst_11 : f32 to vector<16x128xf32>
    %15 = arith.maximumf %13, %14 : vector<16x128xf32>
    %16 = arith.truncf %15 : vector<16x128xf32> to vector<16x128xbf16>
    %c0_12 = arith.constant 0 : index
    %c0_13 = arith.constant 0 : index
    %17 = vector.load %arg6[%c0_12, %c0_13] : memref<128x4xbf16, #tpu.memory_space<vmem>>, vector<128x4xbf16>
    %cst_14 = arith.constant dense<0.000000e+00> : vector<16x4xf32>
    %18 = tpu.matmul %16, %17, %cst_14 {dimension_numbers = #tpu.dot_dimension_numbers<[1], [0], [0], [1], [0, 0, 1, 1], [], []>} : vector<16x128xbf16>, vector<128x4xbf16>, vector<16x4xf32> -> vector<16x4xf32>
    %c0_15 = arith.constant 0 : index
    %c0_16 = arith.constant 0 : index
    %19 = vector.load %arg7[%c0_15, %c0_16] : memref<1x4xf32, #tpu.memory_space<vmem>>, vector<1x4xf32>
    %20 = vector.broadcast %19 : vector<1x4xf32> to vector<16x4xf32>
    %21 = arith.addf %18, %20 : vector<16x4xf32>
    %c0_17 = arith.constant 0 : index
    %c0_18 = arith.constant 0 : index
    %22 = vector.load %arg8[%c0_17, %c0_18] : memref<16x4xf32, #tpu.memory_space<vmem>>, vector<16x4xf32>
    tpu.vector_store %arg8[%c0_17, %c0_18], %21 {strides = array<i32>} : memref<16x4xf32, #tpu.memory_space<vmem>>, vector<16x4xf32>,
    return
  }
  func.func @transform_0(%arg0: i32) -> (i32, i32) {
    %c0_i32 = arith.constant 0 : i32
    %c0_i32_0 = arith.constant 0 : i32
    return %arg0, %c0_i32 : i32, i32
  }
  func.func @transform_1(%arg0: i32) -> (i32, i32) {
    %c0_i32 = arith.constant 0 : i32
    %c0_i32_0 = arith.constant 0 : i32
    %c0_i32_1 = arith.constant 0 : i32
    return %c0_i32, %c0_i32_0 : i32, i32
  }
  func.func @transform_2(%arg0: i32) -> (i32, i32) {
    %c0_i32 = arith.constant 0 : i32
    %c0_i32_0 = arith.constant 0 : i32
    %c0_i32_1 = arith.constant 0 : i32
    return %c0_i32, %c0_i32_0 : i32, i32
  }
  func.func @transform_3(%arg0: i32) -> (i32, i32) {
    %c0_i32 = arith.constant 0 : i32
    %c0_i32_0 = arith.constant 0 : i32
    %c0_i32_1 = arith.constant 0 : i32
    return %c0_i32, %c0_i32_0 : i32, i32
  }
  func.func @transform_4(%arg0: i32) -> (i32, i32) {
    %c0_i32 = arith.constant 0 : i32
    %c0_i32_0 = arith.constant 0 : i32
    %c0_i32_1 = arith.constant 0 : i32
    return %c0_i32, %c0_i32_0 : i32, i32
  }
  func.func @transform_5(%arg0: i32) -> (i32, i32) {
    %c0_i32 = arith.constant 0 : i32
    %c0_i32_0 = arith.constant 0 : i32
    %c0_i32_1 = arith.constant 0 : i32
    return %c0_i32, %c0_i32_0 : i32, i32
  }
  func.func @transform_6(%arg0: i32) -> (i32, i32) {
    %c0_i32 = arith.constant 0 : i32
    %c0_i32_0 = arith.constant 0 : i32
    %c0_i32_1 = arith.constant 0 : i32
    return %c0_i32, %c0_i32_0 : i32, i32
  }
  func.func @transform_7(%arg0: i32) -> (i32, i32) {
    %c0_i32 = arith.constant 0 : i32
    %c0_i32_0 = arith.constant 0 : i32
    return %arg0, %c0_i32 : i32, i32
  }
}

</mosaic_0001>

<llo_original>
// kernel: tpu_custom_call.1
$region0: #{tpu_custom_call.1}
  #allocation0 [shape = 'u32[]', space=smem, size = 0x4, offset = 0x4, fixed_abs, tag = 'smem constant byte address 0x4 - core index']
  #allocation1 [shape = 'u32[72,128]{1,0:T(1,128)}', space=vmem, size = 0x9000, scoped, tag = 'internal scratch']
  %s0 = inlined_call_operand.vmem [shape: bf16[16,8], index: 0, kind: input, shape index: {}]
  %s1 = inlined_call_operand.vmem [shape: bf16[8,128], index: 1, kind: input, shape index: {}]
  %s2 = inlined_call_operand.vmem [shape: f32[1,128], index: 2, kind: input, shape index: {}]
  %s3 = inlined_call_operand.vmem [shape: bf16[128,128], index: 3, kind: input, shape index: {}]
  %s4 = inlined_call_operand.vmem [shape: f32[1,128], index: 4, kind: input, shape index: {}]
  %s5 = inlined_call_operand.vmem [shape: bf16[128,4], index: 5, kind: input, shape index: {}]
  %s6 = inlined_call_operand.vmem [shape: f32[1,4], index: 6, kind: input, shape index: {}]
  %s7 = inlined_call_operand.vmem [shape: f32[16,4], index: 7, kind: output, shape index: {}]
  %s8 = sld [smem:[#allocation0]]
  $region38: #{tpu_custom_call.1} parent=0
    _
  %s10 = ssub.s32 1, %s8
  %s11 = scalar_select 0, %s10, %s8
  // Predicated region
  $region2: #{tpu_custom_call.1} parent=0 // pred_check
    _
  $region3: #{tpu_custom_call.1} parent=0 // pred_check_branch
    %13 = sbr.rel (0) target = $region5
  $region4: #{tpu_custom_call.1} parent=0 // pred_region
    _
  $region5: #{tpu_custom_call.1} parent=0 // pred_fallthru
    _
  // Predicated region
  $region6: #{tpu_custom_call.1} parent=0 // pred_check
    _
  $region7: #{tpu_custom_call.1} parent=0 // pred_check_branch
    %15 = sbr.rel (0) target = $region9
  $region8: #{tpu_custom_call.1} parent=0 // pred_region
    _
  $region9: #{tpu_custom_call.1} parent=0 // pred_fallthru
    _
  // Predicated region
  $region10: #{tpu_custom_call.1} parent=0 // pred_check
    _
  $region11: #{tpu_custom_call.1} parent=0 // pred_check_branch
    %17 = sbr.rel (0) target = $region13
  $region12: #{tpu_custom_call.1} parent=0 // pred_region
    _
  $region13: #{tpu_custom_call.1} parent=0 // pred_fallthru
    _
  // Predicated region
  $region14: #{tpu_custom_call.1} parent=0 // pred_check
    _
  $region15: #{tpu_custom_call.1} parent=0 // pred_check_branch
    %19 = sbr.rel (0) target = $region17
  $region16: #{tpu_custom_call.1} parent=0 // pred_region
    _
  $region17: #{tpu_custom_call.1} parent=0 // pred_fallthru
    _
  // Predicated region
  $region18: #{tpu_custom_call.1} parent=0 // pred_check
    _
  $region19: #{tpu_custom_call.1} parent=0 // pred_check_branch
    %21 = sbr.rel (0) target = $region21
  $region20: #{tpu_custom_call.1} parent=0 // pred_region
    _
  $region21: #{tpu_custom_call.1} parent=0 // pred_fallthru
    _
  // Predicated region
  $region22: #{tpu_custom_call.1} parent=0 // pred_check
    _
  $region23: #{tpu_custom_call.1} parent=0 // pred_check_branch
    %23 = sbr.rel (0) target = $region25
  $region24: #{tpu_custom_call.1} parent=0 // pred_region
    _
  $region25: #{tpu_custom_call.1} parent=0 // pred_fallthru
    _
  // Predicated region
  $region26: #{tpu_custom_call.1} parent=0 // pred_check
    _
  $region27: #{tpu_custom_call.1} parent=0 // pred_check_branch
    %25 = sbr.rel (0) target = $region29
  $region28: #{tpu_custom_call.1} parent=0 // pred_region
    _
  $region29: #{tpu_custom_call.1} parent=0 // pred_fallthru
    _
  %v27 = vld [vmem:[%s0] sm:$0xf]
  %v28 = vld [vmem:[%s0 + $0x4] sm:$0xf]
  %v29 = vld [vmem:[%s1] sm:$0xf]
  %v30 = vld [vmem:[%s2] sm:$0x1]
  %v32 = vperm.slane %v30, 0
  %v36 = vunpack.c.l.b16 %v27
  %v37 = vunpack.c.l.b16 %v28
  %v38 = vpack.c.b16 %v37, %v36
  %vm39 = vcmask 64512
  %v41 = vsel %vm39, %v38, 0
  %vm43 = vcmask 1043456
  %v45 = vsel %vm43, %v29, 0
  %47 = vmatpush.bf16.msra.mxu0 0
  %48 = vmatpush.bf16.msra.mxu0 0
  %49 = vmatpush.bf16.msra.mxu0 0
  %50 = vmatpush.bf16.msra.mxu0 0
  %51 = vmatpush.bf16.msra.mxu0 0
  %52 = vmatpush.bf16.msra.mxu0 0
  %53 = vmatpush.bf16.msra.mxu0 0
  %54 = vmatpush.bf16.msra.mxu0 %v45
  %55 = vmatmul.bf16.gmra.mxu0 %v41
  %v56 = vpop.f32.mrf.mxu0
  %v57 = vadd.f32 %v32, %v56
  %v58 = vpop.f32.mrf.mxu0
  %v59 = vadd.f32 %v32, %v58
  %60 = vdwg.mxu0
  %v61 = vmax.f32 %v57, 0.0
  %v62 = vmax.f32 %v59, 0.0
  %v63 = vpack.c.bf16 %v62, %v61
  %v64 = vld [vmem:[%s3] sm:$0xf]
  %v65 = vld [vmem:[%s3 + $0x4] sm:$0xf]
  %v66 = vld [vmem:[%s3 + $0x8] sm:$0xf]
  %v67 = vld [vmem:[%s3 + $0xc] sm:$0xf]
  %v68 = vld [vmem:[%s3 + $0x10] sm:$0xf]
  %v69 = vld [vmem:[%s3 + $0x14] sm:$0xf]
  %v70 = vld [vmem:[%s3 + $0x18] sm:$0xf]
  %v71 = vld [vmem:[%s3 + $0x1c] sm:$0xf]
  %v72 = vld [vmem:[%s3 + $0x20] sm:$0xf]
  %v73 = vld [vmem:[%s3 + $0x24] sm:$0xf]
  %v74 = vld [vmem:[%s3 + $0x28] sm:$0xf]
  %v75 = vld [vmem:[%s3 + $0x2c] sm:$0xf]
  %v76 = vld [vmem:[%s3 + $0x30] sm:$0xf]
  %v77 = vld [vmem:[%s3 + $0x34] sm:$0xf]
  %v78 = vld [vmem:[%s3 + $0x38] sm:$0xf]
  %v79 = vld [vmem:[%s3 + $0x3c] sm:$0xf]
  %v80 = vld [vmem:[%s4] sm:$0x1]
  %v82 = vperm.slane %v80, 0
  %v100 = vunpack.c.l.b16 %v64
  %v101 = vunpack.c.l.b16 %v65
  %v102 = vunpack.c.l.b16 %v66
  %v103 = vunpack.c.l.b16 %v67
  %v104 = vunpack.c.l.b16 %v68
  %v105 = vunpack.c.l.b16 %v69
  %v106 = vunpack.c.l.b16 %v70
  %v107 = vunpack.c.l.b16 %v71
  %v108 = vunpack.c.l.b16 %v72
  %v109 = vunpack.c.l.b16 %v73
  %v110 = vunpack.c.l.b16 %v74
  %v111 = vunpack.c.l.b16 %v75
  %v112 = vunpack.c.l.b16 %v76
  %v113 = vunpack.c.l.b16 %v77
  %v114 = vunpack.c.l.b16 %v78
  %v115 = vunpack.c.l.b16 %v79
  %v116 = vpack.c.b16 %v101, %v100
  %v117 = vpack.c.b16 %v103, %v102
  %v118 = vpack.c.b16 %v105, %v104
  %v119 = vpack.c.b16 %v107, %v106
  %v120 = vpack.c.b16 %v109, %v108
  %v121 = vpack.c.b16 %v111, %v110
  %v122 = vpack.c.b16 %v113, %v112
  %v123 = vpack.c.b16 %v115, %v114
  %132 = vmatpush.bf16.msra.mxu0 %v123
  %133 = vmatpush.bf16.msra.mxu0 %v122
  %134 = vmatpush.bf16.msra.mxu0 %v121
  %135 = vmatpush.bf16.msra.mxu0 %v120
  %136 = vmatpush.bf16.msra.mxu0 %v119
  %137 = vmatpush.bf16.msra.mxu0 %v118
  %138 = vmatpush.bf16.msra.mxu0 %v117
  %139 = vmatpush.bf16.msra.mxu0 %v116
  %140 = vmatmul.bf16.gmra.mxu0 %v63
  %v141 = vpop.f32.mrf.mxu0
  %v142 = vadd.f32 %v82, %v141
  %v143 = vpop.f32.mrf.mxu0
  %v144 = vadd.f32 %v82, %v143
  %145 = vdwg.mxu0
  %v146 = vmax.f32 %v142, 0.0
  %v147 = vmax.f32 %v144, 0.0
  %v148 = vpack.c.bf16 %v147, %v146
  %v149 = vld [vmem:[%s5] sm:$0xf]
  %v150 = vld [vmem:[%s5 + $0x4] sm:$0xf]
  %v151 = vld [vmem:[%s5 + $0x8] sm:$0xf]
  %v152 = vld [vmem:[%s5 + $0xc] sm:$0xf]
  %v153 = vld [vmem:[%s5 + $0x10] sm:$0xf]
  %v154 = vld [vmem:[%s5 + $0x14] sm:$0xf]
  %v155 = vld [vmem:[%s5 + $0x18] sm:$0xf]
  %v156 = vld [vmem:[%s5 + $0x1c] sm:$0xf]
  %v157 = vld [vmem:[%s5 + $0x20] sm:$0xf]
  %v158 = vld [vmem:[%s5 + $0x24] sm:$0xf]
  %v159 = vld [vmem:[%s5 + $0x28] sm:$0xf]
  %v160 = vld [vmem:[%s5 + $0x2c] sm:$0xf]
  %v161 = vld [vmem:[%s5 + $0x30] sm:$0xf]
  %v162 = vld [vmem:[%s5 + $0x34] sm:$0xf]
  %v163 = vld [vmem:[%s5 + $0x38] sm:$0xf]
  %v164 = vld [vmem:[%s5 + $0x3c] sm:$0xf]
  %v165 = vld [vmem:[%s6] sm:$0x1]
  %v167 = vperm.slane %v165, 0
  %v185 = vunpack.c.l.b16 %v149
  %v186 = vunpack.c.l.b16 %v150
  %v187 = vunpack.c.l.b16 %v151
  %v188 = vunpack.c.l.b16 %v152
  %v189 = vunpack.c.l.b16 %v153
  %v190 = vunpack.c.l.b16 %v154
  %v191 = vunpack.c.l.b16 %v155
  %v192 = vunpack.c.l.b16 %v156
  %v193 = vunpack.c.l.b16 %v157
  %v194 = vunpack.c.l.b16 %v158
  %v195 = vunpack.c.l.b16 %v159
  %v196 = vunpack.c.l.b16 %v160
  %v197 = vunpack.c.l.b16 %v161
  %v198 = vunpack.c.l.b16 %v162
  %v199 = vunpack.c.l.b16 %v163
  %v200 = vunpack.c.l.b16 %v164
  %v201 = vpack.c.b16 %v186, %v185
  %v202 = vpack.c.b16 %v188, %v187
  %v203 = vpack.c.b16 %v190, %v189
  %v204 = vpack.c.b16 %v192, %v191
  %v205 = vpack.c.b16 %v194, %v193
  %v206 = vpack.c.b16 %v196, %v195
  %v207 = vpack.c.b16 %v198, %v197
  %v208 = vpack.c.b16 %v200, %v199
  %217 = vmatpush.bf16.msra.mxu0 %v208
  %218 = vmatpush.bf16.msra.mxu0 %v207
  %219 = vmatpush.bf16.msra.mxu0 %v206
  %220 = vmatpush.bf16.msra.mxu0 %v205
  %221 = vmatpush.bf16.msra.mxu0 %v204
  %222 = vmatpush.bf16.msra.mxu0 %v203
  %223 = vmatpush.bf16.msra.mxu0 %v202
  %224 = vmatpush.bf16.msra.mxu0 %v201
  %225 = vmatmul.bf16.gmra.mxu0 %v148
  %v226 = vpop.f32.mrf.mxu0
  %v227 = vadd.f32 %v167, %v226
  %v228 = vpop.f32.mrf.mxu0
  %v229 = vadd.f32 %v167, %v228
  %230 = vdwg.mxu0
  %vm231 = vcmask 31744
  %232 = vst.msk [vmem:[%s7] sm:$0xff] %vm231, %v227
  %233 = vst.msk [vmem:[%s7 + $0x8] sm:$0xff] %vm231, %v229
  // Predicated region
  $region30: #{tpu_custom_call.1} parent=0 // pred_check
    _
  $region31: #{tpu_custom_call.1} parent=0 // pred_check_branch
    %235 = sbr.rel (0) target = $region33
  $region32: #{tpu_custom_call.1} parent=0 // pred_region
    _
  $region33: #{tpu_custom_call.1} parent=0 // pred_fallthru
    _
  // Predicated region
  $region34: #{tpu_custom_call.1} parent=0 // pred_check
    _
  $region35: #{tpu_custom_call.1} parent=0 // pred_check_branch
    %237 = sbr.rel (0) target = $region37
  $region36: #{tpu_custom_call.1} parent=0 // pred_region
    _
  $region37: #{tpu_custom_call.1} parent=0 // pred_fallthru
    _

</llo_original>
